<compile_context>
chip_gen: v5e
topology: v5e:2x2
jax: 0.10.0
libtpu: 0.0.40
codegen_flags: <defaults>
</compile_context>

<pallas_src>
import functools

import jax
import jax.numpy as jnp
from jax.experimental import pallas as pl
from jax.experimental.pallas import tpu as pltpu


def _round_up(x, m):
    return (x + m - 1) // m * m


def _fused_kernel(patches_ref, w_ref, s_ref, o_ref, out_ref):
    # conv1 as matmul (MXU); accumulate in f32 regardless of operand dtype.
    y = jnp.dot(patches_ref[...], w_ref[...], preferred_element_type=jnp.float32)
    # folded ContentAwareFM (1x1 depthwise) + gamma residual, then ReLU:
    #   relu(y * (1 + gamma*w_c) + gamma*b_c)
    out_ref[...] = jnp.maximum(y * s_ref[...] + o_ref[...], 0.0).astype(out_ref.dtype)


@functools.partial(
    jax.jit, static_argnames=("kernel_size", "compute_dtype", "tm_max"))
def basic_block_forward(x_nchw, conv_w, cafm_w, cafm_b, cafm_gamma,
                        kernel_size, compute_dtype="float32", tm_max=1024):
    """Forward pass of BasicBlock_ (use_cafm=True) for one selected segment.

    x_nchw:      (N, Cin, H, W)    float32
    conv_w:      (Cout, Cin, K, K) float32  (conv1 weight, bias=False)
    cafm_w:      (Cout,)           depthwise 1x1 weight of ContentAwareFM
    cafm_b:      (Cout,)           depthwise 1x1 bias
    cafm_gamma:  scalar            ContentAwareFM gamma
    compute_dtype: "float32" | "bfloat16" matmul operand dtype (f32 accumulate)
    """
    N, Cin, H, W = x_nchw.shape
    Cout = conv_w.shape[0]
    K = kernel_size
    pad = K // 2
    mm_dtype = jnp.bfloat16 if compute_dtype == "bfloat16" else jnp.float32
    in_bytes = jnp.dtype(mm_dtype).itemsize

    # --- glue: NCHW -> NHWC, im2col -------------------------------------
    x = jnp.transpose(x_nchw, (0, 2, 3, 1))                       # (N,H,W,Cin)
    xp = jnp.pad(x, ((0, 0), (pad, pad), (pad, pad), (0, 0)))
    cols = []
    for dy in range(K):
        for dx in range(K):
            cols.append(xp[:, dy:dy + H, dx:dx + W, :])
    patches = jnp.concatenate(cols, axis=-1)                      # (N,H,W,K*K*Cin)

    M = N * H * W
    KC = K * K * Cin
    patches = patches.reshape(M, KC).astype(mm_dtype)

    # Lane-dense output tiling: Cout tile tn (multiple of 128), Cout padded
    # up to a multiple of tn so every store is a full-lane unmasked vst.
    Cout_pad = _round_up(Cout, 128)
    tn = min(Cout_pad, 256)
    Cout_pad = _round_up(Cout_pad, tn)

    # VMEM-aware M-tile size: double-buffered patch tile + output tile, plus
    # double-buffered weight tile, kept well under the scoped-VMEM budget.
    budget = 24 * 1024 * 1024
    fixed = 2 * (KC * tn * in_bytes + 2 * tn * 4)         # weights + scale/offset
    per_row = 2 * (KC * in_bytes + tn * 4)                # patch row + f32 out row
    tm = max(128, min(int(tm_max), (budget - fixed) // max(per_row, 1)))
    tm = (tm // 128) * 128
    tm = min(tm, _round_up(M, 128))

    M_pad = _round_up(M, tm)
    if M_pad != M:
        patches = jnp.pad(patches, ((0, M_pad - M), (0, 0)))

    # weight rearranged so row index = (dy*K + dx)*Cin + ci ; zero-pad columns.
    w_mat = jnp.transpose(conv_w, (2, 3, 1, 0)).reshape(KC, Cout)
    w_mat = jnp.pad(w_mat, ((0, 0), (0, Cout_pad - Cout))).astype(mm_dtype)

    # Fold CAFM into a single per-channel scale/offset (computed once here).
    gamma = jnp.asarray(cafm_gamma, jnp.float32).reshape(())
    scale = 1.0 + gamma * cafm_w.astype(jnp.float32)              # (Cout,)
    offset = gamma * cafm_b.astype(jnp.float32)                   # (Cout,)
    scale = jnp.pad(scale, (0, Cout_pad - Cout),
                    constant_values=1.0).reshape(1, Cout_pad)
    offset = jnp.pad(offset, (0, Cout_pad - Cout)).reshape(1, Cout_pad)

    grid = (M_pad // tm, Cout_pad // tn)
    cost = pl.CostEstimate(
        flops=2 * M_pad * KC * Cout_pad,
        transcendentals=0,
        bytes_accessed=(M_pad * KC * in_bytes * grid[1]    # patches (per Cout tile)
                        + KC * Cout_pad * in_bytes         # weights
                        + M_pad * Cout_pad * 4),           # f32 output
    )

    # --- Pallas: tiled fused matmul + folded CAFM + ReLU ------------------
    out_flat = pl.pallas_call(
        _fused_kernel,
        out_shape=jax.ShapeDtypeStruct((M_pad, Cout_pad), jnp.float32),
        grid=grid,
        in_specs=[
            pl.BlockSpec((tm, KC), lambda i, j: (i, 0)),       # patch tile
            pl.BlockSpec((KC, tn), lambda i, j: (0, j)),       # weight tile (resident)
            pl.BlockSpec((1, tn), lambda i, j: (0, j)),        # per-channel scale
            pl.BlockSpec((1, tn), lambda i, j: (0, j)),        # per-channel offset
        ],
        out_specs=pl.BlockSpec((tm, tn), lambda i, j: (i, j)),
        compiler_params=pltpu.CompilerParams(
            dimension_semantics=("parallel", "parallel"),
            vmem_limit_bytes=32 * 1024 * 1024),
        cost_estimate=cost,
    )(patches, w_mat, scale, offset)

    # --- glue: strip padding, back to NCHW --------------------------------
    out = out_flat[:M, :Cout].reshape(N, H, W, Cout)
    return jnp.transpose(out, (0, 3, 1, 2))


def _reference(x_nchw, conv_w, cafm_w, cafm_b, cafm_gamma):
    """Pure-JAX reference matching the PyTorch forward."""
    y = jax.lax.conv_general_dilated(
        x_nchw, conv_w, window_strides=(1, 1), padding="SAME",
        dimension_numbers=("NCHW", "OIHW", "NCHW"))
    Cout = conv_w.shape[0]
    t = y * cafm_w.reshape(1, Cout, 1, 1) + cafm_b.reshape(1, Cout, 1, 1)
    y = t * cafm_gamma + y
    return jnp.maximum(y, 0.0)


if __name__ == "__main__":
    # Mock args: cafm=True, use_cafm=True, segnum=2; conv = default EDSR-style
    # "same"-padding conv, bias=False, act=ReLU(inplace=True).
    N, Cin, Cout, H, W, K = 2, 4, 8, 16, 16, 3
    SEGNUM = 2
    NUM = 1  # which ContentAwareFM to use (the `num` forward argument)

    key = jax.random.PRNGKey(0)
    k_x, k_w, k_dw, k_db, k_g = jax.random.split(key, 5)

    x = jax.random.normal(k_x, (N, Cin, H, W), jnp.float32)
    conv_w = jax.random.normal(k_w, (Cout, Cin, K, K), jnp.float32) * 0.1

    # ContentAwareFM params per segment; depthwise 1x1 conv weight is
    # (Cout, 1, 1, 1) in PyTorch -> flattened to (Cout,) here. gamma is a
    # scalar (zero-initialized in the module; set nonzero deterministically
    # so the CAFM path actually exercises compute).
    cafm_ws = jax.random.normal(k_dw, (SEGNUM, Cout), jnp.float32) * 0.1
    cafm_bs = jax.random.normal(k_db, (SEGNUM, Cout), jnp.float32) * 0.1
    cafm_gammas = jax.random.normal(k_g, (SEGNUM,), jnp.float32) * 0.1

    ref = _reference(x, conv_w, cafm_ws[NUM], cafm_bs[NUM], cafm_gammas[NUM])

    # f32 matmul operands: exact-semantics path.
    out = basic_block_forward(
        x, conv_w, cafm_ws[NUM], cafm_bs[NUM], cafm_gammas[NUM],
        kernel_size=K, compute_dtype="float32")
    out = jax.block_until_ready(out)
    assert out.shape == (N, Cout, H, W)
    assert jnp.allclose(out, ref, atol=1e-4, rtol=1e-4), "f32 mismatch vs reference"

    # bf16 matmul operands (f32 accumulation): v6e/v7x fast path, looser tol.
    out_bf16 = basic_block_forward(
        x, conv_w, cafm_ws[NUM], cafm_bs[NUM], cafm_gammas[NUM],
        kernel_size=K, compute_dtype="bfloat16")
    out_bf16 = jax.block_until_ready(out_bf16)
    assert jnp.allclose(out_bf16, ref, atol=5e-2, rtol=5e-2), "bf16 mismatch vs reference"

    print("KERNEL_OK")
</pallas_src>

<mosaic_0001>
module attributes {stable_mosaic.version = 11 : i64} {
  func.func @_fused_kernel(%arg0: i32, %arg1: i32, %arg2: memref<512x36xf32, #tpu.memory_space<vmem>>, %arg3: memref<36x128xf32, #tpu.memory_space<vmem>>, %arg4: memref<1x128xf32, #tpu.memory_space<vmem>>, %arg5: memref<1x128xf32, #tpu.memory_space<vmem>>, %arg6: memref<512x128xf32, #tpu.memory_space<vmem>>) attributes {dimension_semantics = [#tpu.dimension_semantics<parallel>, #tpu.dimension_semantics<parallel>], iteration_bounds = array<i64: 1, 1>, scalar_prefetch = 0 : i64, scratch_operands = 0 : i64, tpu.core_type = #tpu.core_type<tc>, window_params = [{transform_indices = @transform_0, window_bounds = array<i64: 512, 36>}, {transform_indices = @transform_1, window_bounds = array<i64: 36, 128>}, {transform_indices = @transform_2, window_bounds = array<i64: 1, 128>}, {transform_indices = @transform_3, window_bounds = array<i64: 1, 128>}, {transform_indices = @transform_4, window_bounds = array<i64: 512, 128>}]} {
    %c0 = arith.constant 0 : index
    %c0_0 = arith.constant 0 : index
    %0 = vector.load %arg2[%c0, %c0_0] : memref<512x36xf32, #tpu.memory_space<vmem>>, vector<512x36xf32>
    %c0_1 = arith.constant 0 : index
    %c0_2 = arith.constant 0 : index
    %1 = vector.load %arg3[%c0_1, %c0_2] : memref<36x128xf32, #tpu.memory_space<vmem>>, vector<36x128xf32>
    %cst = arith.constant dense<0.000000e+00> : vector<512x128xf32>
    %2 = tpu.matmul %0, %1, %cst {dimension_numbers = #tpu.dot_dimension_numbers<[1], [0], [0], [1], [0, 0, 1, 1], [], []>} : vector<512x36xf32>, vector<36x128xf32>, vector<512x128xf32> -> vector<512x128xf32>
    %c0_3 = arith.constant 0 : index
    %c0_4 = arith.constant 0 : index
    %3 = vector.load %arg4[%c0_3, %c0_4] : memref<1x128xf32, #tpu.memory_space<vmem>>, vector<1x128xf32>
    %4 = vector.broadcast %3 : vector<1x128xf32> to vector<512x128xf32>
    %5 = arith.mulf %2, %4 : vector<512x128xf32>
    %c0_5 = arith.constant 0 : index
    %c0_6 = arith.constant 0 : index
    %6 = vector.load %arg5[%c0_5, %c0_6] : memref<1x128xf32, #tpu.memory_space<vmem>>, vector<1x128xf32>
    %7 = vector.broadcast %6 : vector<1x128xf32> to vector<512x128xf32>
    %8 = arith.addf %5, %7 : vector<512x128xf32>
    %cst_7 = arith.constant 0.000000e+00 : f32
    %9 = vector.broadcast %cst_7 : f32 to vector<512x128xf32>
    %10 = arith.maximumf %8, %9 : vector<512x128xf32>
    %c0_8 = arith.constant 0 : index
    %c0_9 = arith.constant 0 : index
    %11 = vector.load %arg6[%c0_8, %c0_9] : memref<512x128xf32, #tpu.memory_space<vmem>>, vector<512x128xf32>
    tpu.vector_store %arg6[%c0_8, %c0_9], %10 {strides = array<i32>} : memref<512x128xf32, #tpu.memory_space<vmem>>, vector<512x128xf32>,
    return
  }
  func.func @transform_0(%arg0: i32, %arg1: i32) -> (i32, i32) {
    %c0_i32 = arith.constant 0 : i32
    %c0_i32_0 = arith.constant 0 : i32
    return %arg0, %c0_i32 : i32, i32
  }
  func.func @transform_1(%arg0: i32, %arg1: i32) -> (i32, i32) {
    %c0_i32 = arith.constant 0 : i32
    %c0_i32_0 = arith.constant 0 : i32
    return %c0_i32, %arg1 : i32, i32
  }
  func.func @transform_2(%arg0: i32, %arg1: i32) -> (i32, i32) {
    %c0_i32 = arith.constant 0 : i32
    %c0_i32_0 = arith.constant 0 : i32
    return %c0_i32, %arg1 : i32, i32
  }
  func.func @transform_3(%arg0: i32, %arg1: i32) -> (i32, i32) {
    %c0_i32 = arith.constant 0 : i32
    %c0_i32_0 = arith.constant 0 : i32
    return %c0_i32, %arg1 : i32, i32
  }
  func.func @transform_4(%arg0: i32, %arg1: i32) -> (i32, i32) {
    %c0_i32 = arith.constant 0 : i32
    return %arg0, %arg1 : i32, i32
  }
}

</mosaic_0001>

<llo_original>
// kernel: basic_block_forward.1
$region0: #{basic_block_forward.1}
  #allocation0 [shape = 'u32[]', space=smem, size = 0x4, offset = 0x4, fixed_abs, tag = 'smem constant byte address 0x4 - core index']
  #allocation1 [shape = 'u32[72,128]{1,0:T(1,128)}', space=vmem, size = 0x9000, scoped, tag = 'internal scratch']
  %s0 = inlined_call_operand.vmem [shape: f32[512,36], index: 0, kind: input, shape index: {}]
  %s1 = inlined_call_operand.vmem [shape: f32[36,128], index: 1, kind: input, shape index: {}]
  %s2 = inlined_call_operand.vmem [shape: f32[1,128], index: 2, kind: input, shape index: {}]
  %s3 = inlined_call_operand.vmem [shape: f32[1,128], index: 3, kind: input, shape index: {}]
  %s4 = inlined_call_operand.vmem [shape: f32[512,128], index: 4, kind: output, shape index: {}]
  %s5 = sld [smem:[#allocation0]]
  $region26: #{basic_block_forward.1} parent=0
    _
  %s7 = ssub.s32 1, %s5
  %s8 = scalar_select 0, %s7, %s5
  // Predicated region
  $region2: #{basic_block_forward.1} parent=0 // pred_check
    _
  $region3: #{basic_block_forward.1} parent=0 // pred_check_branch
    %10 = sbr.rel (0) target = $region5
  $region4: #{basic_block_forward.1} parent=0 // pred_region
    _
  $region5: #{basic_block_forward.1} parent=0 // pred_fallthru
    _
  // Predicated region
  $region6: #{basic_block_forward.1} parent=0 // pred_check
    _
  $region7: #{basic_block_forward.1} parent=0 // pred_check_branch
    %12 = sbr.rel (0) target = $region9
  $region8: #{basic_block_forward.1} parent=0 // pred_region
    _
  $region9: #{basic_block_forward.1} parent=0 // pred_fallthru
    _
  // Predicated region
  $region10: #{basic_block_forward.1} parent=0 // pred_check
    _
  $region11: #{basic_block_forward.1} parent=0 // pred_check_branch
    %14 = sbr.rel (0) target = $region13
  $region12: #{basic_block_forward.1} parent=0 // pred_region
    _
  $region13: #{basic_block_forward.1} parent=0 // pred_fallthru
    _
  // Predicated region
  $region14: #{basic_block_forward.1} parent=0 // pred_check
    _
  $region15: #{basic_block_forward.1} parent=0 // pred_check_branch
    %16 = sbr.rel (0) target = $region17
  $region16: #{basic_block_forward.1} parent=0 // pred_region
    _
  $region17: #{basic_block_forward.1} parent=0 // pred_fallthru
    _
  %v17 = vld [vmem:[%s0] sm:$0xff]
  %v18 = vld [vmem:[%s0 + $0x8] sm:$0xff]
  %v19 = vld [vmem:[%s0 + $0x10] sm:$0xff]
  %v20 = vld [vmem:[%s0 + $0x18] sm:$0xff]
  %v21 = vld [vmem:[%s0 + $0x20] sm:$0xff]
  %v22 = vld [vmem:[%s0 + $0x28] sm:$0xff]
  %v23 = vld [vmem:[%s0 + $0x30] sm:$0xff]
  %v24 = vld [vmem:[%s0 + $0x38] sm:$0xff]
  %v25 = vld [vmem:[%s0 + $0x40] sm:$0xff]
  %v26 = vld [vmem:[%s0 + $0x48] sm:$0xff]
  %v27 = vld [vmem:[%s0 + $0x50] sm:$0xff]
  %v28 = vld [vmem:[%s0 + $0x58] sm:$0xff]
  %v29 = vld [vmem:[%s0 + $0x60] sm:$0xff]
  %v30 = vld [vmem:[%s0 + $0x68] sm:$0xff]
  %v31 = vld [vmem:[%s0 + $0x70] sm:$0xff]
  %v32 = vld [vmem:[%s0 + $0x78] sm:$0xff]
  %v33 = vld [vmem:[%s0 + $0x80] sm:$0xff]
  %v34 = vld [vmem:[%s0 + $0x88] sm:$0xff]
  %v35 = vld [vmem:[%s0 + $0x90] sm:$0xff]
  %v36 = vld [vmem:[%s0 + $0x98] sm:$0xff]
  %v37 = vld [vmem:[%s0 + $0xa0] sm:$0xff]
  %v38 = vld [vmem:[%s0 + $0xa8] sm:$0xff]
  %v39 = vld [vmem:[%s0 + $0xb0] sm:$0xff]
  %v40 = vld [vmem:[%s0 + $0xb8] sm:$0xff]
  %v41 = vld [vmem:[%s0 + $0xc0] sm:$0xff]
  %v42 = vld [vmem:[%s0 + $0xc8] sm:$0xff]
  %v43 = vld [vmem:[%s0 + $0xd0] sm:$0xff]
  %v44 = vld [vmem:[%s0 + $0xd8] sm:$0xff]
  %v45 = vld [vmem:[%s0 + $0xe0] sm:$0xff]
  %v46 = vld [vmem:[%s0 + $0xe8] sm:$0xff]
  %v47 = vld [vmem:[%s0 + $0xf0] sm:$0xff]
  %v48 = vld [vmem:[%s0 + $0xf8] sm:$0xff]
  %v49 = vld [vmem:[%s0 + $0x100] sm:$0xff]
  %v50 = vld [vmem:[%s0 + $0x108] sm:$0xff]
  %v51 = vld [vmem:[%s0 + $0x110] sm:$0xff]
  %v52 = vld [vmem:[%s0 + $0x118] sm:$0xff]
  %v53 = vld [vmem:[%s0 + $0x120] sm:$0xff]
  %v54 = vld [vmem:[%s0 + $0x128] sm:$0xff]
  %v55 = vld [vmem:[%s0 + $0x130] sm:$0xff]
  %v56 = vld [vmem:[%s0 + $0x138] sm:$0xff]
  %v57 = vld [vmem:[%s0 + $0x140] sm:$0xff]
  %v58 = vld [vmem:[%s0 + $0x148] sm:$0xff]
  %v59 = vld [vmem:[%s0 + $0x150] sm:$0xff]
  %v60 = vld [vmem:[%s0 + $0x158] sm:$0xff]
  %v61 = vld [vmem:[%s0 + $0x160] sm:$0xff]
  %v62 = vld [vmem:[%s0 + $0x168] sm:$0xff]
  %v63 = vld [vmem:[%s0 + $0x170] sm:$0xff]
  %v64 = vld [vmem:[%s0 + $0x178] sm:$0xff]
  %v65 = vld [vmem:[%s0 + $0x180] sm:$0xff]
  %v66 = vld [vmem:[%s0 + $0x188] sm:$0xff]
  %v67 = vld [vmem:[%s0 + $0x190] sm:$0xff]
  %v68 = vld [vmem:[%s0 + $0x198] sm:$0xff]
  %v69 = vld [vmem:[%s0 + $0x1a0] sm:$0xff]
  %v70 = vld [vmem:[%s0 + $0x1a8] sm:$0xff]
  %v71 = vld [vmem:[%s0 + $0x1b0] sm:$0xff]
  %v72 = vld [vmem:[%s0 + $0x1b8] sm:$0xff]
  %v73 = vld [vmem:[%s0 + $0x1c0] sm:$0xff]
  %v74 = vld [vmem:[%s0 + $0x1c8] sm:$0xff]
  %v75 = vld [vmem:[%s0 + $0x1d0] sm:$0xff]
  %v76 = vld [vmem:[%s0 + $0x1d8] sm:$0xff]
  %v77 = vld [vmem:[%s0 + $0x1e0] sm:$0xff]
  %v78 = vld [vmem:[%s0 + $0x1e8] sm:$0xff]
  %v79 = vld [vmem:[%s0 + $0x1f0] sm:$0xff]
  %v80 = vld [vmem:[%s0 + $0x1f8] sm:$0xff]
  %v81 = vld [vmem:[%s1] sm:$0xff]
  %v82 = vld [vmem:[%s1 + $0x8] sm:$0xff]
  %v83 = vld [vmem:[%s1 + $0x10] sm:$0xff]
  %v84 = vld [vmem:[%s1 + $0x18] sm:$0xff]
  %v85 = vld [vmem:[%s1 + $0x20] sm:$0xf]
  %vm86 = vcmask 293888
  %v88 = vsel %vm86, %v17, 0
  %v91 = vsel %vm86, %v18, 0
  %v94 = vsel %vm86, %v19, 0
  %v97 = vsel %vm86, %v20, 0
  %v100 = vsel %vm86, %v21, 0
  %v103 = vsel %vm86, %v22, 0
  %v106 = vsel %vm86, %v23, 0
  %v109 = vsel %vm86, %v24, 0
  %v112 = vsel %vm86, %v25, 0
  %v115 = vsel %vm86, %v26, 0
  %v118 = vsel %vm86, %v27, 0
  %v121 = vsel %vm86, %v28, 0
  %v124 = vsel %vm86, %v29, 0
  %v127 = vsel %vm86, %v30, 0
  %v130 = vsel %vm86, %v31, 0
  %v133 = vsel %vm86, %v32, 0
  %v136 = vsel %vm86, %v33, 0
  %v139 = vsel %vm86, %v34, 0
  %v142 = vsel %vm86, %v35, 0
  %v145 = vsel %vm86, %v36, 0
  %v148 = vsel %vm86, %v37, 0
  %v151 = vsel %vm86, %v38, 0
  %v154 = vsel %vm86, %v39, 0
  %v157 = vsel %vm86, %v40, 0
  %v160 = vsel %vm86, %v41, 0
  %v163 = vsel %vm86, %v42, 0
  %v166 = vsel %vm86, %v43, 0
  %v169 = vsel %vm86, %v44, 0
  %v172 = vsel %vm86, %v45, 0
  %v175 = vsel %vm86, %v46, 0
  %v178 = vsel %vm86, %v47, 0
  %v181 = vsel %vm86, %v48, 0
  %v184 = vsel %vm86, %v49, 0
  %v187 = vsel %vm86, %v50, 0
  %v190 = vsel %vm86, %v51, 0
  %v193 = vsel %vm86, %v52, 0
  %v196 = vsel %vm86, %v53, 0
  %v199 = vsel %vm86, %v54, 0
  %v202 = vsel %vm86, %v55, 0
  %v205 = vsel %vm86, %v56, 0
  %v208 = vsel %vm86, %v57, 0
  %v211 = vsel %vm86, %v58, 0
  %v214 = vsel %vm86, %v59, 0
  %v217 = vsel %vm86, %v60, 0
  %v220 = vsel %vm86, %v61, 0
  %v223 = vsel %vm86, %v62, 0
  %v226 = vsel %vm86, %v63, 0
  %v229 = vsel %vm86, %v64, 0
  %v232 = vsel %vm86, %v65, 0
  %v235 = vsel %vm86, %v66, 0
  %v238 = vsel %vm86, %v67, 0
  %v241 = vsel %vm86, %v68, 0
  %v244 = vsel %vm86, %v69, 0
  %v247 = vsel %vm86, %v70, 0
  %v250 = vsel %vm86, %v71, 0
  %v253 = vsel %vm86, %v72, 0
  %v256 = vsel %vm86, %v73, 0
  %v259 = vsel %vm86, %v74, 0
  %v262 = vsel %vm86, %v75, 0
  %v265 = vsel %vm86, %v76, 0
  %v268 = vsel %vm86, %v77, 0
  %v271 = vsel %vm86, %v78, 0
  %v274 = vsel %vm86, %v79, 0
  %v277 = vsel %vm86, %v80, 0
  %vm279 = vcmask 1043456
  %v281 = vsel %vm279, %v85, 0
  %283 = vmatpush.msra.mxu0 0.0
  %284 = vmatpush.msra.mxu0 0.0
  %285 = vmatpush.msra.mxu0 0.0
  %286 = vmatpush.msra.mxu0 0.0
  %287 = vmatpush.msra.mxu0 0.0
  %288 = vmatpush.msra.mxu0 0.0
  %289 = vmatpush.msra.mxu0 0.0
  %290 = vmatpush.msra.mxu0 0.0
  %291 = vmatpush.msra.mxu0 0.0
  %292 = vmatpush.msra.mxu0 0.0
  %293 = vmatpush.msra.mxu0 0.0
  %294 = vmatpush.msra.mxu0 %v281
  %295 = vmatpush.msra.mxu0 %v84
  %296 = vmatpush.msra.mxu0 %v83
  %297 = vmatpush.msra.mxu0 %v82
  %298 = vmatpush.msra.mxu0 %v81
  %299 = vmatmul.f32.gmra.mxu0 %v88
  %v300 = vpop.f32.mrf.mxu0
  %v301 = vadd.f32 0.0, %v300
  %302 = vmatmul.f32.gmra.mxu0 %v91
  %v303 = vpop.f32.mrf.mxu0
  %v304 = vadd.f32 0.0, %v303
  %305 = vmatmul.f32.gmra.mxu0 %v94
  %v306 = vpop.f32.mrf.mxu0
  %v307 = vadd.f32 0.0, %v306
  %308 = vmatmul.f32.gmra.mxu0 %v97
  %v309 = vpop.f32.mrf.mxu0
  %v310 = vadd.f32 0.0, %v309
  %311 = vmatmul.f32.gmra.mxu0 %v100
  %v312 = vpop.f32.mrf.mxu0
  %v313 = vadd.f32 0.0, %v312
  %314 = vmatmul.f32.gmra.mxu0 %v103
  %v315 = vpop.f32.mrf.mxu0
  %v316 = vadd.f32 0.0, %v315
  %317 = vmatmul.f32.gmra.mxu0 %v106
  %v318 = vpop.f32.mrf.mxu0
  %v319 = vadd.f32 0.0, %v318
  %320 = vmatmul.f32.gmra.mxu0 %v109
  %v321 = vpop.f32.mrf.mxu0
  %v322 = vadd.f32 0.0, %v321
  %323 = vmatmul.f32.gmra.mxu0 %v112
  %v324 = vpop.f32.mrf.mxu0
  %v325 = vadd.f32 0.0, %v324
  %326 = vmatmul.f32.gmra.mxu0 %v115
  %v327 = vpop.f32.mrf.mxu0
  %v328 = vadd.f32 0.0, %v327
  %329 = vmatmul.f32.gmra.mxu0 %v118
  %v330 = vpop.f32.mrf.mxu0
  %v331 = vadd.f32 0.0, %v330
  %332 = vmatmul.f32.gmra.mxu0 %v121
  %v333 = vpop.f32.mrf.mxu0
  %v334 = vadd.f32 0.0, %v333
  %335 = vmatmul.f32.gmra.mxu0 %v124
  %v336 = vpop.f32.mrf.mxu0
  %v337 = vadd.f32 0.0, %v336
  %338 = vmatmul.f32.gmra.mxu0 %v127
  %v339 = vpop.f32.mrf.mxu0
  %v340 = vadd.f32 0.0, %v339
  %341 = vmatmul.f32.gmra.mxu0 %v130
  %v342 = vpop.f32.mrf.mxu0
  %v343 = vadd.f32 0.0, %v342
  %344 = vmatmul.f32.gmra.mxu0 %v133
  %v345 = vpop.f32.mrf.mxu0
  %v346 = vadd.f32 0.0, %v345
  %347 = vmatmul.f32.gmra.mxu0 %v136
  %v348 = vpop.f32.mrf.mxu0
  %v349 = vadd.f32 0.0, %v348
  %350 = vmatmul.f32.gmra.mxu0 %v139
  %v351 = vpop.f32.mrf.mxu0
  %v352 = vadd.f32 0.0, %v351
  %353 = vmatmul.f32.gmra.mxu0 %v142
  %v354 = vpop.f32.mrf.mxu0
  %v355 = vadd.f32 0.0, %v354
  %356 = vmatmul.f32.gmra.mxu0 %v145
  %v357 = vpop.f32.mrf.mxu0
  %v358 = vadd.f32 0.0, %v357
  %359 = vmatmul.f32.gmra.mxu0 %v148
  %v360 = vpop.f32.mrf.mxu0
  %v361 = vadd.f32 0.0, %v360
  %362 = vmatmul.f32.gmra.mxu0 %v151
  %v363 = vpop.f32.mrf.mxu0
  %v364 = vadd.f32 0.0, %v363
  %365 = vmatmul.f32.gmra.mxu0 %v154
  %v366 = vpop.f32.mrf.mxu0
  %v367 = vadd.f32 0.0, %v366
  %368 = vmatmul.f32.gmra.mxu0 %v157
  %v369 = vpop.f32.mrf.mxu0
  %v370 = vadd.f32 0.0, %v369
  %371 = vmatmul.f32.gmra.mxu0 %v160
  %v372 = vpop.f32.mrf.mxu0
  %v373 = vadd.f32 0.0, %v372
  %374 = vmatmul.f32.gmra.mxu0 %v163
  %v375 = vpop.f32.mrf.mxu0
  %v376 = vadd.f32 0.0, %v375
  %377 = vmatmul.f32.gmra.mxu0 %v166
  %v378 = vpop.f32.mrf.mxu0
  %v379 = vadd.f32 0.0, %v378
  %380 = vmatmul.f32.gmra.mxu0 %v169
  %v381 = vpop.f32.mrf.mxu0
  %v382 = vadd.f32 0.0, %v381
  %383 = vmatmul.f32.gmra.mxu0 %v172
  %v384 = vpop.f32.mrf.mxu0
  %v385 = vadd.f32 0.0, %v384
  %386 = vmatmul.f32.gmra.mxu0 %v175
  %v387 = vpop.f32.mrf.mxu0
  %v388 = vadd.f32 0.0, %v387
  %389 = vmatmul.f32.gmra.mxu0 %v178
  %v390 = vpop.f32.mrf.mxu0
  %v391 = vadd.f32 0.0, %v390
  %392 = vmatmul.f32.gmra.mxu0 %v181
  %v393 = vpop.f32.mrf.mxu0
  %v394 = vadd.f32 0.0, %v393
  %395 = vmatmul.f32.gmra.mxu0 %v184
  %v396 = vpop.f32.mrf.mxu0
  %v397 = vadd.f32 0.0, %v396
  %398 = vmatmul.f32.gmra.mxu0 %v187
  %v399 = vpop.f32.mrf.mxu0
  %v400 = vadd.f32 0.0, %v399
  %401 = vmatmul.f32.gmra.mxu0 %v190
  %v402 = vpop.f32.mrf.mxu0
  %v403 = vadd.f32 0.0, %v402
  %404 = vmatmul.f32.gmra.mxu0 %v193
  %v405 = vpop.f32.mrf.mxu0
  %v406 = vadd.f32 0.0, %v405
  %407 = vmatmul.f32.gmra.mxu0 %v196
  %v408 = vpop.f32.mrf.mxu0
  %v409 = vadd.f32 0.0, %v408
  %410 = vmatmul.f32.gmra.mxu0 %v199
  %v411 = vpop.f32.mrf.mxu0
  %v412 = vadd.f32 0.0, %v411
  %413 = vmatmul.f32.gmra.mxu0 %v202
  %v414 = vpop.f32.mrf.mxu0
  %v415 = vadd.f32 0.0, %v414
  %416 = vmatmul.f32.gmra.mxu0 %v205
  %v417 = vpop.f32.mrf.mxu0
  %v418 = vadd.f32 0.0, %v417
  %419 = vmatmul.f32.gmra.mxu0 %v208
  %v420 = vpop.f32.mrf.mxu0
  %v421 = vadd.f32 0.0, %v420
  %422 = vmatmul.f32.gmra.mxu0 %v211
  %v423 = vpop.f32.mrf.mxu0
  %v424 = vadd.f32 0.0, %v423
  %425 = vmatmul.f32.gmra.mxu0 %v214
  %v426 = vpop.f32.mrf.mxu0
  %v427 = vadd.f32 0.0, %v426
  %428 = vmatmul.f32.gmra.mxu0 %v217
  %v429 = vpop.f32.mrf.mxu0
  %v430 = vadd.f32 0.0, %v429
  %431 = vmatmul.f32.gmra.mxu0 %v220
  %v432 = vpop.f32.mrf.mxu0
  %v433 = vadd.f32 0.0, %v432
  %434 = vmatmul.f32.gmra.mxu0 %v223
  %v435 = vpop.f32.mrf.mxu0
  %v436 = vadd.f32 0.0, %v435
  %437 = vmatmul.f32.gmra.mxu0 %v226
  %v438 = vpop.f32.mrf.mxu0
  %v439 = vadd.f32 0.0, %v438
  %440 = vmatmul.f32.gmra.mxu0 %v229
  %v441 = vpop.f32.mrf.mxu0
  %v442 = vadd.f32 0.0, %v441
  %443 = vmatmul.f32.gmra.mxu0 %v232
  %v444 = vpop.f32.mrf.mxu0
  %v445 = vadd.f32 0.0, %v444
  %446 = vmatmul.f32.gmra.mxu0 %v235
  %v447 = vpop.f32.mrf.mxu0
  %v448 = vadd.f32 0.0, %v447
  %449 = vmatmul.f32.gmra.mxu0 %v238
  %v450 = vpop.f32.mrf.mxu0
  %v451 = vadd.f32 0.0, %v450
  %452 = vmatmul.f32.gmra.mxu0 %v241
  %v453 = vpop.f32.mrf.mxu0
  %v454 = vadd.f32 0.0, %v453
  %455 = vmatmul.f32.gmra.mxu0 %v244
  %v456 = vpop.f32.mrf.mxu0
  %v457 = vadd.f32 0.0, %v456
  %458 = vmatmul.f32.gmra.mxu0 %v247
  %v459 = vpop.f32.mrf.mxu0
  %v460 = vadd.f32 0.0, %v459
  %461 = vmatmul.f32.gmra.mxu0 %v250
  %v462 = vpop.f32.mrf.mxu0
  %v463 = vadd.f32 0.0, %v462
  %464 = vmatmul.f32.gmra.mxu0 %v253
  %v465 = vpop.f32.mrf.mxu0
  %v466 = vadd.f32 0.0, %v465
  %467 = vmatmul.f32.gmra.mxu0 %v256
  %v468 = vpop.f32.mrf.mxu0
  %v469 = vadd.f32 0.0, %v468
  %470 = vmatmul.f32.gmra.mxu0 %v259
  %v471 = vpop.f32.mrf.mxu0
  %v472 = vadd.f32 0.0, %v471
  %473 = vmatmul.f32.gmra.mxu0 %v262
  %v474 = vpop.f32.mrf.mxu0
  %v475 = vadd.f32 0.0, %v474
  %476 = vmatmul.f32.gmra.mxu0 %v265
  %v477 = vpop.f32.mrf.mxu0
  %v478 = vadd.f32 0.0, %v477
  %479 = vmatmul.f32.gmra.mxu0 %v268
  %v480 = vpop.f32.mrf.mxu0
  %v481 = vadd.f32 0.0, %v480
  %482 = vmatmul.f32.gmra.mxu0 %v271
  %v483 = vpop.f32.mrf.mxu0
  %v484 = vadd.f32 0.0, %v483
  %485 = vmatmul.f32.gmra.mxu0 %v274
  %v486 = vpop.f32.mrf.mxu0
  %v487 = vadd.f32 0.0, %v486
  %488 = vmatmul.f32.gmra.mxu0 %v277
  %v489 = vpop.f32.mrf.mxu0
  %v490 = vadd.f32 0.0, %v489
  %491 = vdwg.mxu0
  %v492 = vld [vmem:[%s2] sm:$0x1]
  %v494 = vperm.slane %v492, 0
  %v496 = vmul.f32 %v301, %v494
  %v497 = vmul.f32 %v304, %v494
  %v498 = vmul.f32 %v307, %v494
  %v499 = vmul.f32 %v310, %v494
  %v500 = vmul.f32 %v313, %v494
  %v501 = vmul.f32 %v316, %v494
  %v502 = vmul.f32 %v319, %v494
  %v503 = vmul.f32 %v322, %v494
  %v504 = vmul.f32 %v325, %v494
  %v505 = vmul.f32 %v328, %v494
  %v506 = vmul.f32 %v331, %v494
  %v507 = vmul.f32 %v334, %v494
  %v508 = vmul.f32 %v337, %v494
  %v509 = vmul.f32 %v340, %v494
  %v510 = vmul.f32 %v343, %v494
  %v511 = vmul.f32 %v346, %v494
  %v512 = vmul.f32 %v349, %v494
  %v513 = vmul.f32 %v352, %v494
  %v514 = vmul.f32 %v355, %v494
  %v515 = vmul.f32 %v358, %v494
  %v516 = vmul.f32 %v361, %v494
  %v517 = vmul.f32 %v364, %v494
  %v518 = vmul.f32 %v367, %v494
  %v519 = vmul.f32 %v370, %v494
  %v520 = vmul.f32 %v373, %v494
  %v521 = vmul.f32 %v376, %v494
  %v522 = vmul.f32 %v379, %v494
  %v523 = vmul.f32 %v382, %v494
  %v524 = vmul.f32 %v385, %v494
  %v525 = vmul.f32 %v388, %v494
  %v526 = vmul.f32 %v391, %v494
  %v527 = vmul.f32 %v394, %v494
  %v528 = vmul.f32 %v397, %v494
  %v529 = vmul.f32 %v400, %v494
  %v530 = vmul.f32 %v403, %v494
  %v531 = vmul.f32 %v406, %v494
  %v532 = vmul.f32 %v409, %v494
  %v533 = vmul.f32 %v412, %v494
  %v534 = vmul.f32 %v415, %v494
  %v535 = vmul.f32 %v418, %v494
  %v536 = vmul.f32 %v421, %v494
  %v537 = vmul.f32 %v424, %v494
  %v538 = vmul.f32 %v427, %v494
  %v539 = vmul.f32 %v430, %v494
  %v540 = vmul.f32 %v433, %v494
  %v541 = vmul.f32 %v436, %v494
  %v542 = vmul.f32 %v439, %v494
  %v543 = vmul.f32 %v442, %v494
  %v544 = vmul.f32 %v445, %v494
  %v545 = vmul.f32 %v448, %v494
  %v546 = vmul.f32 %v451, %v494
  %v547 = vmul.f32 %v454, %v494
  %v548 = vmul.f32 %v457, %v494
  %v549 = vmul.f32 %v460, %v494
  %v550 = vmul.f32 %v463, %v494
  %v551 = vmul.f32 %v466, %v494
  %v552 = vmul.f32 %v469, %v494
  %v553 = vmul.f32 %v472, %v494
  %v554 = vmul.f32 %v475, %v494
  %v555 = vmul.f32 %v478, %v494
  %v556 = vmul.f32 %v481, %v494
  %v557 = vmul.f32 %v484, %v494
  %v558 = vmul.f32 %v487, %v494
  %v559 = vmul.f32 %v490, %v494
  %v560 = vld [vmem:[%s3] sm:$0x1]
  %v562 = vperm.slane %v560, 0
  %v564 = vadd.f32 %v496, %v562
  %v565 = vadd.f32 %v497, %v562
  %v566 = vadd.f32 %v498, %v562
  %v567 = vadd.f32 %v499, %v562
  %v568 = vadd.f32 %v500, %v562
  %v569 = vadd.f32 %v501, %v562
  %v570 = vadd.f32 %v502, %v562
  %v571 = vadd.f32 %v503, %v562
  %v572 = vadd.f32 %v504, %v562
  %v573 = vadd.f32 %v505, %v562
  %v574 = vadd.f32 %v506, %v562
  %v575 = vadd.f32 %v507, %v562
  %v576 = vadd.f32 %v508, %v562
  %v577 = vadd.f32 %v509, %v562
  %v578 = vadd.f32 %v510, %v562
  %v579 = vadd.f32 %v511, %v562
  %v580 = vadd.f32 %v512, %v562
  %v581 = vadd.f32 %v513, %v562
  %v582 = vadd.f32 %v514, %v562
  %v583 = vadd.f32 %v515, %v562
  %v584 = vadd.f32 %v516, %v562
  %v585 = vadd.f32 %v517, %v562
  %v586 = vadd.f32 %v518, %v562
  %v587 = vadd.f32 %v519, %v562
  %v588 = vadd.f32 %v520, %v562
  %v589 = vadd.f32 %v521, %v562
  %v590 = vadd.f32 %v522, %v562
  %v591 = vadd.f32 %v523, %v562
  %v592 = vadd.f32 %v524, %v562
  %v593 = vadd.f32 %v525, %v562
  %v594 = vadd.f32 %v526, %v562
  %v595 = vadd.f32 %v527, %v562
  %v596 = vadd.f32 %v528, %v562
  %v597 = vadd.f32 %v529, %v562
  %v598 = vadd.f32 %v530, %v562
  %v599 = vadd.f32 %v531, %v562
  %v600 = vadd.f32 %v532, %v562
  %v601 = vadd.f32 %v533, %v562
  %v602 = vadd.f32 %v534, %v562
  %v603 = vadd.f32 %v535, %v562
  %v604 = vadd.f32 %v536, %v562
  %v605 = vadd.f32 %v537, %v562
  %v606 = vadd.f32 %v538, %v562
  %v607 = vadd.f32 %v539, %v562
  %v608 = vadd.f32 %v540, %v562
  %v609 = vadd.f32 %v541, %v562
  %v610 = vadd.f32 %v542, %v562
  %v611 = vadd.f32 %v543, %v562
  %v612 = vadd.f32 %v544, %v562
  %v613 = vadd.f32 %v545, %v562
  %v614 = vadd.f32 %v546, %v562
  %v615 = vadd.f32 %v547, %v562
  %v616 = vadd.f32 %v548, %v562
  %v617 = vadd.f32 %v549, %v562
  %v618 = vadd.f32 %v550, %v562
  %v619 = vadd.f32 %v551, %v562
  %v620 = vadd.f32 %v552, %v562
  %v621 = vadd.f32 %v553, %v562
  %v622 = vadd.f32 %v554, %v562
  %v623 = vadd.f32 %v555, %v562
  %v624 = vadd.f32 %v556, %v562
  %v625 = vadd.f32 %v557, %v562
  %v626 = vadd.f32 %v558, %v562
  %v627 = vadd.f32 %v559, %v562
  %v628 = vmax.f32 %v564, 0.0
  %v629 = vmax.f32 %v565, 0.0
  %v630 = vmax.f32 %v566, 0.0
  %v631 = vmax.f32 %v567, 0.0
  %v632 = vmax.f32 %v568, 0.0
  %v633 = vmax.f32 %v569, 0.0
  %v634 = vmax.f32 %v570, 0.0
  %v635 = vmax.f32 %v571, 0.0
  %v636 = vmax.f32 %v572, 0.0
  %v637 = vmax.f32 %v573, 0.0
  %v638 = vmax.f32 %v574, 0.0
  %v639 = vmax.f32 %v575, 0.0
  %v640 = vmax.f32 %v576, 0.0
  %v641 = vmax.f32 %v577, 0.0
  %v642 = vmax.f32 %v578, 0.0
  %v643 = vmax.f32 %v579, 0.0
  %v644 = vmax.f32 %v580, 0.0
  %v645 = vmax.f32 %v581, 0.0
  %v646 = vmax.f32 %v582, 0.0
  %v647 = vmax.f32 %v583, 0.0
  %v648 = vmax.f32 %v584, 0.0
  %v649 = vmax.f32 %v585, 0.0
  %v650 = vmax.f32 %v586, 0.0
  %v651 = vmax.f32 %v587, 0.0
  %v652 = vmax.f32 %v588, 0.0
  %v653 = vmax.f32 %v589, 0.0
  %v654 = vmax.f32 %v590, 0.0
  %v655 = vmax.f32 %v591, 0.0
  %v656 = vmax.f32 %v592, 0.0
  %v657 = vmax.f32 %v593, 0.0
  %v658 = vmax.f32 %v594, 0.0
  %v659 = vmax.f32 %v595, 0.0
  %v660 = vmax.f32 %v596, 0.0
  %v661 = vmax.f32 %v597, 0.0
  %v662 = vmax.f32 %v598, 0.0
  %v663 = vmax.f32 %v599, 0.0
  %v664 = vmax.f32 %v600, 0.0
  %v665 = vmax.f32 %v601, 0.0
  %v666 = vmax.f32 %v602, 0.0
  %v667 = vmax.f32 %v603, 0.0
  %v668 = vmax.f32 %v604, 0.0
  %v669 = vmax.f32 %v605, 0.0
  %v670 = vmax.f32 %v606, 0.0
  %v671 = vmax.f32 %v607, 0.0
  %v672 = vmax.f32 %v608, 0.0
  %v673 = vmax.f32 %v609, 0.0
  %v674 = vmax.f32 %v610, 0.0
  %v675 = vmax.f32 %v611, 0.0
  %v676 = vmax.f32 %v612, 0.0
  %v677 = vmax.f32 %v613, 0.0
  %v678 = vmax.f32 %v614, 0.0
  %v679 = vmax.f32 %v615, 0.0
  %v680 = vmax.f32 %v616, 0.0
  %v681 = vmax.f32 %v617, 0.0
  %v682 = vmax.f32 %v618, 0.0
  %v683 = vmax.f32 %v619, 0.0
  %v684 = vmax.f32 %v620, 0.0
  %v685 = vmax.f32 %v621, 0.0
  %v686 = vmax.f32 %v622, 0.0
  %v687 = vmax.f32 %v623, 0.0
  %v688 = vmax.f32 %v624, 0.0
  %v689 = vmax.f32 %v625, 0.0
  %v690 = vmax.f32 %v626, 0.0
  %v691 = vmax.f32 %v627, 0.0
  %692 = vst [vmem:[%s4] sm:$0xff] %v628
  %693 = vst [vmem:[%s4 + $0x8] sm:$0xff] %v629
  %694 = vst [vmem:[%s4 + $0x10] sm:$0xff] %v630
  %695 = vst [vmem:[%s4 + $0x18] sm:$0xff] %v631
  %696 = vst [vmem:[%s4 + $0x20] sm:$0xff] %v632
  %697 = vst [vmem:[%s4 + $0x28] sm:$0xff] %v633
  %698 = vst [vmem:[%s4 + $0x30] sm:$0xff] %v634
  %699 = vst [vmem:[%s4 + $0x38] sm:$0xff] %v635
  %700 = vst [vmem:[%s4 + $0x40] sm:$0xff] %v636
  %701 = vst [vmem:[%s4 + $0x48] sm:$0xff] %v637
  %702 = vst [vmem:[%s4 + $0x50] sm:$0xff] %v638
  %703 = vst [vmem:[%s4 + $0x58] sm:$0xff] %v639
  %704 = vst [vmem:[%s4 + $0x60] sm:$0xff] %v640
  %705 = vst [vmem:[%s4 + $0x68] sm:$0xff] %v641
  %706 = vst [vmem:[%s4 + $0x70] sm:$0xff] %v642
  %707 = vst [vmem:[%s4 + $0x78] sm:$0xff] %v643
  %708 = vst [vmem:[%s4 + $0x80] sm:$0xff] %v644
  %709 = vst [vmem:[%s4 + $0x88] sm:$0xff] %v645
  %710 = vst [vmem:[%s4 + $0x90] sm:$0xff] %v646
  %711 = vst [vmem:[%s4 + $0x98] sm:$0xff] %v647
  %712 = vst [vmem:[%s4 + $0xa0] sm:$0xff] %v648
  %713 = vst [vmem:[%s4 + $0xa8] sm:$0xff] %v649
  %714 = vst [vmem:[%s4 + $0xb0] sm:$0xff] %v650
  %715 = vst [vmem:[%s4 + $0xb8] sm:$0xff] %v651
  %716 = vst [vmem:[%s4 + $0xc0] sm:$0xff] %v652
  %717 = vst [vmem:[%s4 + $0xc8] sm:$0xff] %v653
  %718 = vst [vmem:[%s4 + $0xd0] sm:$0xff] %v654
  %719 = vst [vmem:[%s4 + $0xd8] sm:$0xff] %v655
  %720 = vst [vmem:[%s4 + $0xe0] sm:$0xff] %v656
  %721 = vst [vmem:[%s4 + $0xe8] sm:$0xff] %v657
  %722 = vst [vmem:[%s4 + $0xf0] sm:$0xff] %v658
  %723 = vst [vmem:[%s4 + $0xf8] sm:$0xff] %v659
  %724 = vst [vmem:[%s4 + $0x100] sm:$0xff] %v660
  %725 = vst [vmem:[%s4 + $0x108] sm:$0xff] %v661
  %726 = vst [vmem:[%s4 + $0x110] sm:$0xff] %v662
  %727 = vst [vmem:[%s4 + $0x118] sm:$0xff] %v663
  %728 = vst [vmem:[%s4 + $0x120] sm:$0xff] %v664
  %729 = vst [vmem:[%s4 + $0x128] sm:$0xff] %v665
  %730 = vst [vmem:[%s4 + $0x130] sm:$0xff] %v666
  %731 = vst [vmem:[%s4 + $0x138] sm:$0xff] %v667
  %732 = vst [vmem:[%s4 + $0x140] sm:$0xff] %v668
  %733 = vst [vmem:[%s4 + $0x148] sm:$0xff] %v669
  %734 = vst [vmem:[%s4 + $0x150] sm:$0xff] %v670
  %735 = vst [vmem:[%s4 + $0x158] sm:$0xff] %v671
  %736 = vst [vmem:[%s4 + $0x160] sm:$0xff] %v672
  %737 = vst [vmem:[%s4 + $0x168] sm:$0xff] %v673
  %738 = vst [vmem:[%s4 + $0x170] sm:$0xff] %v674
  %739 = vst [vmem:[%s4 + $0x178] sm:$0xff] %v675
  %740 = vst [vmem:[%s4 + $0x180] sm:$0xff] %v676
  %741 = vst [vmem:[%s4 + $0x188] sm:$0xff] %v677
  %742 = vst [vmem:[%s4 + $0x190] sm:$0xff] %v678
  %743 = vst [vmem:[%s4 + $0x198] sm:$0xff] %v679
  %744 = vst [vmem:[%s4 + $0x1a0] sm:$0xff] %v680
  %745 = vst [vmem:[%s4 + $0x1a8] sm:$0xff] %v681
  %746 = vst [vmem:[%s4 + $0x1b0] sm:$0xff] %v682
  %747 = vst [vmem:[%s4 + $0x1b8] sm:$0xff] %v683
  %748 = vst [vmem:[%s4 + $0x1c0] sm:$0xff] %v684
  %749 = vst [vmem:[%s4 + $0x1c8] sm:$0xff] %v685
  %750 = vst [vmem:[%s4 + $0x1d0] sm:$0xff] %v686
  %751 = vst [vmem:[%s4 + $0x1d8] sm:$0xff] %v687
  %752 = vst [vmem:[%s4 + $0x1e0] sm:$0xff] %v688
  %753 = vst [vmem:[%s4 + $0x1e8] sm:$0xff] %v689
  %754 = vst [vmem:[%s4 + $0x1f0] sm:$0xff] %v690
  %755 = vst [vmem:[%s4 + $0x1f8] sm:$0xff] %v691
  // Predicated region
  $region18: #{basic_block_forward.1} parent=0 // pred_check
    _
  $region19: #{basic_block_forward.1} parent=0 // pred_check_branch
    %757 = sbr.rel (0) target = $region21
  $region20: #{basic_block_forward.1} parent=0 // pred_region
    _
  $region21: #{basic_block_forward.1} parent=0 // pred_fallthru
    _
  // Predicated region
  $region22: #{basic_block_forward.1} parent=0 // pred_check
    _
  $region23: #{basic_block_forward.1} parent=0 // pred_check_branch
    %759 = sbr.rel (0) target = $region25
  $region24: #{basic_block_forward.1} parent=0 // pred_region
    _
  $region25: #{basic_block_forward.1} parent=0 // pred_fallthru
    _

</llo_original>
